<compile_context>
chip_gen: v5e
topology: v5e:2x2
jax: 0.10.0
libtpu: 0.0.40
codegen_flags: <defaults>
</compile_context>

<pallas_src>
import math
import functools

import jax
import jax.numpy as jnp
from jax import lax
from jax.experimental import pallas as pl
from jax.experimental.pallas import tpu as pltpu


# ---------------------------------------------------------------------------
# Tiled dense projection:  out = x @ w_t + b      (w_t is pre-transposed (K, N))
# ---------------------------------------------------------------------------
def _linear_kernel(x_ref, wt_ref, b_ref, o_ref, acc_ref):
    @pl.when(pl.program_id(2) == 0)
    def _init():
        acc_ref[...] = jnp.zeros_like(acc_ref)

    acc_ref[...] += jnp.dot(x_ref[...], wt_ref[...],
                            preferred_element_type=jnp.float32)

    @pl.when(pl.program_id(2) == pl.num_programs(2) - 1)
    def _finalize():
        o_ref[...] = (acc_ref[...] + b_ref[...]).astype(o_ref.dtype)


def _pick_tile(dim, target, align):
    """Largest multiple of `align` <= target that divides dim, else the full dim."""
    if dim <= target:
        return dim
    t = (target // align) * align
    while t >= align:
        if dim % t == 0:
            return t
        t -= align
    return dim


def linear(x, w_t, b, *, tm=256, tn=256, tk=512):
    """x: (M, K), w_t: (K, Nout) pre-transposed, b: (Nout,) -> (M, Nout)."""
    M, K = x.shape
    K2, Nout = w_t.shape
    assert K == K2
    tm = _pick_tile(M, tm, 8)        # sublane-aligned
    tn = _pick_tile(Nout, tn, 128)   # lane-aligned
    tk = _pick_tile(K, tk, 128)      # lane (x) / sublane (w_t) aligned
    grid = (M // tm, Nout // tn, K // tk)
    b2 = b.reshape(1, Nout).astype(jnp.float32)

    itemsize = jnp.dtype(x.dtype).itemsize
    vmem_needed = 2 * (tm * tk + tk * tn + tm * tn) * itemsize + tm * tn * 4 + (2 << 20)
    vmem_limit = int(min(max(vmem_needed, 16 << 20), 64 << 20))
    cost = pl.CostEstimate(
        flops=int(2 * M * K * Nout),
        transcendentals=0,
        bytes_accessed=int((M * K + K * Nout + M * Nout) * itemsize),
    )

    return pl.pallas_call(
        _linear_kernel,
        grid=grid,
        out_shape=jax.ShapeDtypeStruct((M, Nout), x.dtype),
        in_specs=[
            pl.BlockSpec((tm, tk), lambda i, j, k: (i, k)),
            pl.BlockSpec((tk, tn), lambda i, j, k: (k, j)),
            pl.BlockSpec((1, tn), lambda i, j, k: (0, j)),
        ],
        out_specs=pl.BlockSpec((tm, tn), lambda i, j, k: (i, j)),
        scratch_shapes=[pltpu.VMEM((tm, tn), jnp.float32)],
        compiler_params=pltpu.CompilerParams(
            dimension_semantics=("parallel", "parallel", "arbitrary"),
            vmem_limit_bytes=vmem_limit,
        ),
        cost_estimate=cost,
    )(x, w_t, b2)


# ---------------------------------------------------------------------------
# Fused attention + output-projection core.
# One grid step handles all Hp heads of one batch element.
#   qkv_ref : (L, 1, 3*Hp, hd)  fused q/k/v projection for this batch element
#   wo_ref  : (Ep, E)           pre-transposed out-proj weight (resident)
#   bo_ref  : (1, E)            out-proj bias (f32)
#   o_ref   : (1, L, E)         lane-dense projected output slab
#   w_refs  : ()                       weights_mode == 0 (need_weights=False)
#             ((1, L, S),)             weights_mode == 1 (head-averaged, fused)
#             ((1, Hp, L, S),)         weights_mode == 2 (per-head)
# ---------------------------------------------------------------------------
def _attn_kernel(qkv_ref, wo_ref, bo_ref, o_ref, *w_refs,
                 scale, num_heads, weights_mode):
    heads_out = []
    w_sum = None
    for h in range(num_heads):                       # unrolled: heads batched per step
        q = qkv_ref[:, 0, h, :] * scale              # (L, hd)   q-scaling as in PyTorch
        k = qkv_ref[:, 0, num_heads + h, :]          # (S, hd)
        v = qkv_ref[:, 0, 2 * num_heads + h, :]      # (S, hd)
        # q @ k^T without materializing a transpose of k.
        s = lax.dot_general(q, k, (((1,), (1,)), ((), ())),
                            preferred_element_type=jnp.float32)       # (L, S) f32
        m = jnp.max(s, axis=-1, keepdims=True)
        p = jnp.exp(s - m)
        denom = jnp.sum(p, axis=-1, keepdims=True)
        # EUP approximate reciprocal: ~1e-4 relative error on softmax normalization.
        attn = p * pl.reciprocal(denom, approx=True)
        o_h = jnp.dot(attn.astype(v.dtype), v,
                      preferred_element_type=jnp.float32)              # (L, hd) f32
        heads_out.append(o_h)
        if weights_mode == 1:
            w_sum = attn if w_sum is None else (w_sum + attn)
        elif weights_mode == 2:
            w_refs[0][0, h] = attn.astype(w_refs[0].dtype)

    # Lane-dense (L, Ep) slab, then fused output projection on the MXU.
    o_slab = jnp.concatenate(heads_out, axis=-1)                       # (L, Ep) f32
    out = jnp.dot(o_slab.astype(wo_ref.dtype), wo_ref[...],
                  preferred_element_type=jnp.float32)                  # (L, E)  f32
    out = out + bo_ref[...]
    o_ref[0] = out.astype(o_ref.dtype)                                 # single (L, E) store
    if weights_mode == 1:
        w_refs[0][0] = (w_sum * (1.0 / num_heads)).astype(w_refs[0].dtype)


def attention_core(qkv4, w_out_t, b_out, num_heads, head_dim, scale,
                   weights_mode, out_dtype):
    """qkv4: (L, N, 3*Hp, hd) -> (out (N, L, E), weights or None)."""
    L, N, G, hd = qkv4.shape
    assert G == 3 * num_heads and hd == head_dim
    S = L                                   # self-attention
    Ep = num_heads * head_dim
    E = w_out_t.shape[1]
    b2 = b_out.reshape(1, E).astype(jnp.float32)

    kernel = functools.partial(_attn_kernel, scale=scale,
                               num_heads=num_heads, weights_mode=weights_mode)

    o_shape = jax.ShapeDtypeStruct((N, L, E), out_dtype)
    o_spec = pl.BlockSpec((1, L, E), lambda n: (n, 0, 0))
    if weights_mode == 0:
        out_shape, out_specs = o_shape, o_spec
    elif weights_mode == 1:
        out_shape = (o_shape, jax.ShapeDtypeStruct((N, L, S), jnp.float32))
        out_specs = (o_spec, pl.BlockSpec((1, L, S), lambda n: (n, 0, 0)))
    else:
        out_shape = (o_shape, jax.ShapeDtypeStruct((N, num_heads, L, S), jnp.float32))
        out_specs = (o_spec, pl.BlockSpec((1, num_heads, L, S), lambda n: (n, 0, 0, 0)))

    itemsize = jnp.dtype(qkv4.dtype).itemsize
    w_itemsize = jnp.dtype(w_out_t.dtype).itemsize
    out_itemsize = jnp.dtype(out_dtype).itemsize
    w_out_bytes = 0 if weights_mode == 0 else (
        N * L * S * 4 * (num_heads if weights_mode == 2 else 1))
    cost = pl.CostEstimate(
        flops=int(4 * N * num_heads * L * S * head_dim + 2 * N * L * Ep * E),
        transcendentals=int(N * num_heads * L * S),
        bytes_accessed=int(N * L * G * hd * itemsize + Ep * E * w_itemsize
                           + N * L * E * out_itemsize + w_out_bytes),
    )
    vmem_needed = (2 * L * G * hd * itemsize                 # qkv block (double-buffered)
                   + 2 * Ep * E * w_itemsize                 # resident out-proj weight
                   + 2 * L * E * out_itemsize                # output block
                   + 2 * (0 if weights_mode == 0 else
                          L * S * 4 * (num_heads if weights_mode == 2 else 1))
                   + num_heads * L * S * 4                   # live f32 scores
                   + (4 << 20))
    vmem_limit = int(min(max(vmem_needed, 32 << 20), 64 << 20))

    res = pl.pallas_call(
        kernel,
        grid=(N,),
        out_shape=out_shape,
        in_specs=[
            pl.BlockSpec((L, 1, G, hd), lambda n: (0, n, 0, 0)),
            pl.BlockSpec((Ep, E), lambda n: (0, 0)),   # constant -> stays resident
            pl.BlockSpec((1, E), lambda n: (0, 0)),
        ],
        out_specs=out_specs,
        compiler_params=pltpu.CompilerParams(
            dimension_semantics=("parallel",),
            vmem_limit_bytes=vmem_limit,
        ),
        cost_estimate=cost,
    )(qkv4, w_out_t, b2)

    if weights_mode == 0:
        return res, None
    return res[0], res[1]


# ---------------------------------------------------------------------------
# Module wrapper (world_size=1, rank=0 replica of ParallelMultiheadAttention)
# ---------------------------------------------------------------------------
class ParallelMultiheadAttentionPallas:
    def __init__(self, embed_dim, num_heads, world_size=1, rank=0, bias=True,
                 key=None, compute_dtype=None):
        assert embed_dim % num_heads == 0
        assert num_heads % world_size == 0 and embed_dim % world_size == 0
        self.embed_dim = embed_dim
        self.num_heads = num_heads
        self.world_size = world_size
        self.rank = rank
        self.head_dim = embed_dim // num_heads
        self.Ep = embed_dim // world_size          # embed_dim_per_partition
        self.Hp = num_heads // world_size          # num_heads_per_partition
        self.compute_dtype = compute_dtype
        cd = jnp.float32 if compute_dtype is None else compute_dtype

        # Deterministic synthetic init (module leaves params uninitialized unless
        # copied from a source MultiheadAttention layer).
        k1, k2, k3, k4 = jax.random.split(key, 4)
        bound = 1.0 / math.sqrt(embed_dim)
        w_in = jax.random.uniform(k1, (3 * self.Ep, embed_dim), jnp.float32, -bound, bound)
        b_in = jax.random.uniform(k2, (3 * self.Ep,), jnp.float32, -bound, bound)
        w_out = jax.random.uniform(k3, (embed_dim, self.Ep), jnp.float32, -bound, bound)
        b_out = jax.random.uniform(k4, (embed_dim,), jnp.float32, -bound, bound)

        # Store weights PRE-TRANSPOSED (one-time cost) so forward never calls w.T.
        self.in_proj_weight_t = jnp.asarray(w_in.T, dtype=cd)      # (E, 3*Ep)
        self.out_proj_weight_t = jnp.asarray(w_out.T, dtype=cd)    # (Ep, E)
        self.in_proj_bias = b_in          # f32, added into f32 accumulator
        self.out_proj_bias = b_out        # f32 (divided by world_size if ws>1; here ws=1)

    def __call__(self, query, key=None, value=None, key_padding_mask=None,
                 need_weights=True, attn_mask=None, average_attn_weights=True,
                 is_causal=False):
        # ParallelMultiheadAttention.forward: key = value = query (self-attention);
        # copy/reduce over the model-parallel region are identity at world_size=1.
        del key, value
        if key_padding_mask is not None or attn_mask is not None or is_causal:
            # TODO(synk): masks / causal attention not implemented (module defaults off).
            raise NotImplementedError("masking / is_causal not supported in this port")
        assert query.ndim == 3, "only batched (L, N, E) input supported"  # TODO(synk): 2-D path

        L, N, E = query.shape
        Hp, hd = self.Hp, self.head_dim
        in_dtype = query.dtype
        cd = self.in_proj_weight_t.dtype

        # --- fused input projection (tiled, pipelined) ---
        x = query.reshape(L * N, E).astype(cd)
        qkv = linear(x, self.in_proj_weight_t, self.in_proj_bias)       # (L*N, 3*Ep)
        # Free reshape: columns are ordered (proj, head, dim) -> (L, N, 3*Hp, hd).
        qkv4 = qkv.reshape(L, N, 3 * Hp, hd)

        # --- fused attention + output projection ---
        scale = 1.0 / math.sqrt(hd)
        weights_mode = 0 if not need_weights else (1 if average_attn_weights else 2)
        o, w = attention_core(qkv4, self.out_proj_weight_t, self.out_proj_bias,
                              Hp, hd, scale, weights_mode, in_dtype)    # o: (N, L, E)

        # Single glue transpose back to the module's seq-first (L, N, E) layout.
        attn_output = o.transpose(1, 0, 2)

        if need_weights:
            return attn_output, w     # (N, L, S) averaged or (N, Hp, L, S) per-head
        return attn_output, None


# ---------------------------------------------------------------------------
# Pure-JAX reference (mirrors PyTorch multi_head_attention_forward math)
# ---------------------------------------------------------------------------
def _reference_forward(query, mha):
    L, N, E = query.shape
    H, hd, Ep = mha.Hp, mha.head_dim, mha.Ep
    scale = 1.0 / math.sqrt(hd)
    w_in_t = mha.in_proj_weight_t.astype(jnp.float32)
    w_out_t = mha.out_proj_weight_t.astype(jnp.float32)
    x = query.reshape(L * N, E).astype(jnp.float32)
    qkv = x @ w_in_t + mha.in_proj_bias
    q, k, v = jnp.split(qkv, 3, axis=-1)

    def to_heads(t):
        return t.reshape(L, N * H, hd).transpose(1, 0, 2)

    qh, kh, vh = to_heads(q), to_heads(k), to_heads(v)
    s = jnp.einsum("bld,bsd->bls", qh * scale, kh)
    p = jax.nn.softmax(s, axis=-1)
    o = jnp.einsum("bls,bsd->bld", p, vh)
    o2 = o.transpose(1, 0, 2).reshape(L * N, Ep)
    out = (o2 @ w_out_t + mha.out_proj_bias).reshape(L, N, E)
    w_full = p.reshape(N, H, L, L)
    return out, w_full.mean(axis=1), w_full


if __name__ == "__main__":
    L, N, E, H = 8, 2, 32, 4
    root = jax.random.PRNGKey(0)
    kq, kp = jax.random.split(root)
    query = jax.random.normal(kq, (L, N, E), jnp.float32)   # (seq, batch, embed)

    mha = ParallelMultiheadAttentionPallas(E, H, world_size=1, rank=0, key=kp)
    ref_out, ref_w_avg, ref_w_full = _reference_forward(query, mha)

    # 1) need_weights=True, average_attn_weights=True (fused head-average in kernel)
    out1, w1 = mha(query, query, query)
    out1 = jax.block_until_ready(out1)
    w1 = jax.block_until_ready(w1)
    assert out1.shape == (L, N, E)
    assert w1.shape == (N, L, L)
    assert jnp.allclose(out1, ref_out, rtol=2e-2, atol=2e-2)
    assert jnp.allclose(w1, ref_w_avg, rtol=2e-2, atol=2e-2)

    # 2) need_weights=False (kernel variant with no attention-weight writeback)
    out2, w2 = mha(query, query, query, need_weights=False)
    out2 = jax.block_until_ready(out2)
    assert w2 is None
    assert jnp.allclose(out2, ref_out, rtol=2e-2, atol=2e-2)

    # 3) need_weights=True, average_attn_weights=False (per-head weights)
    out3, w3 = mha(query, query, query, average_attn_weights=False)
    out3 = jax.block_until_ready(out3)
    w3 = jax.block_until_ready(w3)
    assert w3.shape == (N, H, L, L)
    assert jnp.allclose(out3, ref_out, rtol=2e-2, atol=2e-2)
    assert jnp.allclose(w3, ref_w_full, rtol=2e-2, atol=2e-2)

    print("KERNEL_OK")
</pallas_src>

<mosaic_0001>
module attributes {stable_mosaic.version = 11 : i64} {
  func.func @_linear_kernel(%arg0: i32, %arg1: i32, %arg2: i32, %arg3: memref<16x32xf32, #tpu.memory_space<vmem>>, %arg4: memref<32x96xf32, #tpu.memory_space<vmem>>, %arg5: memref<1x96xf32, #tpu.memory_space<vmem>>, %arg6: memref<16x96xf32, #tpu.memory_space<vmem>>, %arg7: memref<16x96xf32, #tpu.memory_space<vmem>>) attributes {dimension_semantics = [#tpu.dimension_semantics<parallel>, #tpu.dimension_semantics<parallel>, #tpu.dimension_semantics<arbitrary>], iteration_bounds = array<i64: 1, 1, 1>, scalar_prefetch = 0 : i64, scratch_operands = 1 : i64, tpu.core_type = #tpu.core_type<tc>, window_params = [{transform_indices = @transform_0, window_bounds = array<i64: 16, 32>}, {transform_indices = @transform_1, window_bounds = array<i64: 32, 96>}, {transform_indices = @transform_2, window_bounds = array<i64: 1, 96>}, {transform_indices = @transform_3, window_bounds = array<i64: 16, 96>}]} {
    %c0_i32 = arith.constant 0 : i32
    %0 = arith.cmpi eq, %arg2, %c0_i32 : i32
    %1 = arith.extui %0 : i1 to i32
    %c0_i32_0 = arith.constant 0 : i32
    %2 = arith.cmpi ne, %1, %c0_i32_0 : i32
    scf.if %2 {
      %cst_10 = arith.constant 0.000000e+00 : f32
      %12 = vector.broadcast %cst_10 : f32 to vector<16x96xf32>
      %c0_11 = arith.constant 0 : index
      %c0_12 = arith.constant 0 : index
      %13 = vector.load %arg7[%c0_11, %c0_12] : memref<16x96xf32, #tpu.memory_space<vmem>>, vector<16x96xf32>
      tpu.vector_store %arg7[%c0_11, %c0_12], %12 {strides = array<i32>} : memref<16x96xf32, #tpu.memory_space<vmem>>, vector<16x96xf32>,
    } else {
    }
    %c0 = arith.constant 0 : index
    %c0_1 = arith.constant 0 : index
    %3 = vector.load %arg7[%c0, %c0_1] : memref<16x96xf32, #tpu.memory_space<vmem>>, vector<16x96xf32>
    %c0_2 = arith.constant 0 : index
    %c0_3 = arith.constant 0 : index
    %4 = vector.load %arg3[%c0_2, %c0_3] : memref<16x32xf32, #tpu.memory_space<vmem>>, vector<16x32xf32>
    %c0_4 = arith.constant 0 : index
    %c0_5 = arith.constant 0 : index
    %5 = vector.load %arg4[%c0_4, %c0_5] : memref<32x96xf32, #tpu.memory_space<vmem>>, vector<32x96xf32>
    %cst = arith.constant dense<0.000000e+00> : vector<16x96xf32>
    %6 = tpu.matmul %4, %5, %cst {dimension_numbers = #tpu.dot_dimension_numbers<[1], [0], [0], [1], [0, 0, 1, 1], [], []>} : vector<16x32xf32>, vector<32x96xf32>, vector<16x96xf32> -> vector<16x96xf32>
    %7 = arith.addf %3, %6 : vector<16x96xf32>
    %c0_6 = arith.constant 0 : index
    %c0_7 = arith.constant 0 : index
    %8 = vector.load %arg7[%c0_6, %c0_7] : memref<16x96xf32, #tpu.memory_space<vmem>>, vector<16x96xf32>
    tpu.vector_store %arg7[%c0_6, %c0_7], %7 {strides = array<i32>} : memref<16x96xf32, #tpu.memory_space<vmem>>, vector<16x96xf32>,
    %c0_i32_8 = arith.constant 0 : i32
    %9 = arith.cmpi eq, %arg2, %c0_i32_8 : i32
    %10 = arith.extui %9 : i1 to i32
    %c0_i32_9 = arith.constant 0 : i32
    %11 = arith.cmpi ne, %10, %c0_i32_9 : i32
    scf.if %11 {
      %c0_10 = arith.constant 0 : index
      %c0_11 = arith.constant 0 : index
      %12 = vector.load %arg7[%c0_10, %c0_11] : memref<16x96xf32, #tpu.memory_space<vmem>>, vector<16x96xf32>
      %c0_12 = arith.constant 0 : index
      %c0_13 = arith.constant 0 : index
      %13 = vector.load %arg5[%c0_12, %c0_13] : memref<1x96xf32, #tpu.memory_space<vmem>>, vector<1x96xf32>
      %14 = vector.broadcast %13 : vector<1x96xf32> to vector<16x96xf32>
      %15 = arith.addf %12, %14 : vector<16x96xf32>
      %c0_14 = arith.constant 0 : index
      %c0_15 = arith.constant 0 : index
      %16 = vector.load %arg6[%c0_14, %c0_15] : memref<16x96xf32, #tpu.memory_space<vmem>>, vector<16x96xf32>
      tpu.vector_store %arg6[%c0_14, %c0_15], %15 {strides = array<i32>} : memref<16x96xf32, #tpu.memory_space<vmem>>, vector<16x96xf32>,
    } else {
    }
    return
  }
  func.func @transform_0(%arg0: i32, %arg1: i32, %arg2: i32) -> (i32, i32) {
    %c0_i32 = arith.constant 0 : i32
    return %arg0, %arg2 : i32, i32
  }
  func.func @transform_1(%arg0: i32, %arg1: i32, %arg2: i32) -> (i32, i32) {
    %c0_i32 = arith.constant 0 : i32
    return %arg2, %arg1 : i32, i32
  }
  func.func @transform_2(%arg0: i32, %arg1: i32, %arg2: i32) -> (i32, i32) {
    %c0_i32 = arith.constant 0 : i32
    %c0_i32_0 = arith.constant 0 : i32
    return %c0_i32, %arg1 : i32, i32
  }
  func.func @transform_3(%arg0: i32, %arg1: i32, %arg2: i32) -> (i32, i32) {
    %c0_i32 = arith.constant 0 : i32
    return %arg0, %arg1 : i32, i32
  }
}

</mosaic_0001>

<llo_original>
// kernel: tpu_custom_call.1
$region0: #{tpu_custom_call.1}
  #allocation0 [shape = 'u32[]', space=smem, size = 0x4, offset = 0x4, fixed_abs, tag = 'smem constant byte address 0x4 - core index']
  #allocation1 [shape = 'u32[72,128]{1,0:T(1,128)}', space=vmem, size = 0x9000, scoped, tag = 'internal scratch']
  #allocation2 [shape = 'f32[16,96]{1,0:T(8,128)}', space=vmem, size = 0x2000, scoped, tag = 'scratch operand']
  %s0 = inlined_call_operand.hbm [shape: f32[16,32], index: 0, kind: input, shape index: {}]
  %s1 = inlined_call_operand.hbm [shape: f32[32,96], index: 1, kind: input, shape index: {}]
  %s2 = inlined_call_operand.vmem [shape: f32[1,96], index: 2, kind: input, shape index: {}]
  %s3 = inlined_call_operand.hbm [shape: f32[16,96], index: 3, kind: output, shape index: {}]
  %s4 = sld [smem:[#allocation0]]
  $region38: #{tpu_custom_call.1} parent=0
    _
  %s6 = ssub.s32 1, %s4
  %s7 = scalar_select 0, %s6, %s4
  $region1: #{tpu_custom_call.1} parent=0
    #allocation3 [shape = 'u8[8192]{0}', space=vmem, size = 0x2000, scoped, tag = 'input window, operand 0, single buffered']
    #allocation4 [shape = 's32[1]{0}', space=sflag, size = 0x4, scoped, tag = 'scoped memory for tpu_custom_call.1']
    #allocation5 [shape = 's32[1]{0}', space=sflag, size = 0x4, scoped, tag = 'scoped memory for tpu_custom_call.1']
    #allocation6 [shape = 'u8[16384]{0}', space=vmem, size = 0x4000, scoped, tag = 'input window, operand 1, single buffered']
    #allocation7 [shape = 's32[1]{0}', space=sflag, size = 0x4, scoped, tag = 'scoped memory for tpu_custom_call.1']
    #allocation8 [shape = 'u8[8192]{0}', space=vmem, size = 0x2000, scoped, tag = 'output window, operand 0, single buffered']
    %8 = vsyncpa [#allocation4], 0
    %9 = vsyncpa [#allocation7], 0
    %10 = vsyncpa [#allocation5], 0
    // Predicated region
    $region2: #{tpu_custom_call.1} parent=1 // pred_check
      _
    $region3: #{tpu_custom_call.1} parent=1 // pred_check_branch
      %12 = sbr.rel (0) target = $region5
    $region4: #{tpu_custom_call.1} parent=1 // pred_region
      %14 = vsyncadd [#allocation4], 0
      %s15 = sshll.u32 %s0, 4
      %s16 = int_to_ptr.hbm [resolvable:$true] %s15
      %s17 = sshll.u32 [#allocation3], 4
      %s18 = int_to_ptr.vmem [resolvable:$true] %s17
      %23 = dma.hbm_to_vmem [thread:$0]  %s16, 256, %s18, [#allocation4], 128, 128, 8
    $region5: #{tpu_custom_call.1} parent=1 // pred_fallthru
      _
    // Predicated region
    $region6: #{tpu_custom_call.1} parent=1 // pred_check
      _
    $region7: #{tpu_custom_call.1} parent=1 // pred_check_branch
      %25 = sbr.rel (0) target = $region9
    $region8: #{tpu_custom_call.1} parent=1 // pred_region
      %27 = vsyncadd [#allocation7], 0
      %s28 = sshll.u32 %s1, 4
      %s29 = int_to_ptr.hbm [resolvable:$true] %s28
      %s30 = sshll.u32 [#allocation6], 4
      %s31 = int_to_ptr.vmem [resolvable:$true] %s30
      %36 = dma.hbm_to_vmem [thread:$0]  %s29, 512, %s31, [#allocation7], 128, 128, 8
    $region9: #{tpu_custom_call.1} parent=1 // pred_fallthru
      _
    // Predicated region
    $region10: #{tpu_custom_call.1} parent=1 // pred_check
      _
    $region11: #{tpu_custom_call.1} parent=1 // pred_check_branch
      %38 = sbr.rel (0) target = $region13
    $region12: #{tpu_custom_call.1} parent=1 // pred_region
      _
    $region13: #{tpu_custom_call.1} parent=1 // pred_fallthru
      _
    // Predicated region
    $region14: #{tpu_custom_call.1} parent=1 // pred_check
      _
    $region15: #{tpu_custom_call.1} parent=1 // pred_check_branch
      %40 = sbr.rel (0) target = $region17
    $region16: #{tpu_custom_call.1} parent=1 // pred_region
      %42 = dma.done [#allocation4], 256
    $region17: #{tpu_custom_call.1} parent=1 // pred_fallthru
      _
    // Predicated region
    $region18: #{tpu_custom_call.1} parent=1 // pred_check
      _
    $region19: #{tpu_custom_call.1} parent=1 // pred_check_branch
      %44 = sbr.rel (0) target = $region21
    $region20: #{tpu_custom_call.1} parent=1 // pred_region
      %46 = dma.done [#allocation7], 512
    $region21: #{tpu_custom_call.1} parent=1 // pred_fallthru
      _
    %p47 = scmp.eq.s32.totalorder 0, 0
    // Predicated region
    $region22: #{tpu_custom_call.1} parent=1 // pred_check
      %p48 = pneg %p47
    $region23: #{tpu_custom_call.1} parent=1 // pred_check_branch
      %50 = sbr.rel (%p48) target = $region25
    $region24: #{tpu_custom_call.1} parent=1 // pred_region
      %vm51 = vcmask 785408
      %52 = vst.msk [vmem:[#allocation2] sm:$0xff] %vm51, 0.0
      %53 = vst.msk [vmem:[#allocation2 + $0x8] sm:$0xff] %vm51, 0.0
    $region25: #{tpu_custom_call.1} parent=1 // pred_fallthru
      _
    %v54 = vld [vmem:[#allocation2] sm:$0xff]
    %v55 = vld [vmem:[#allocation2 + $0x8] sm:$0xff]
    %v56 = vld [vmem:[#allocation3] sm:$0xff]
    %v57 = vld [vmem:[#allocation3 + $0x8] sm:$0xff]
    %v58 = vld [vmem:[#allocation6] sm:$0xff]
    %v59 = vld [vmem:[#allocation6 + $0x8] sm:$0xff]
    %v60 = vld [vmem:[#allocation6 + $0x10] sm:$0xff]
    %v61 = vld [vmem:[#allocation6 + $0x18] sm:$0xff]
    %vm62 = vcmask 261120
    %v64 = vsel %vm62, %v56, 0
    %v67 = vsel %vm62, %v57, 0
    %69 = vmatpush.msra.mxu0 0.0
    %70 = vmatpush.msra.mxu0 0.0
    %71 = vmatpush.msra.mxu0 0.0
    %72 = vmatpush.msra.mxu0 0.0
    %73 = vmatpush.msra.mxu0 0.0
    %74 = vmatpush.msra.mxu0 0.0
    %75 = vmatpush.msra.mxu0 0.0
    %76 = vmatpush.msra.mxu0 0.0
    %77 = vmatpush.msra.mxu0 0.0
    %78 = vmatpush.msra.mxu0 0.0
    %79 = vmatpush.msra.mxu0 0.0
    %80 = vmatpush.msra.mxu0 0.0
    %81 = vmatpush.msra.mxu0 %v61
    %82 = vmatpush.msra.mxu0 %v60
    %83 = vmatpush.msra.mxu0 %v59
    %84 = vmatpush.msra.mxu0 %v58
    %85 = vmatmul.f32.gmra.mxu0 %v64
    %v86 = vpop.f32.mrf.mxu0
    %v87 = vadd.f32 0.0, %v86
    %88 = vmatmul.f32.gmra.mxu0 %v67
    %v89 = vpop.f32.mrf.mxu0
    %v90 = vadd.f32 0.0, %v89
    %91 = vdwg.mxu0
    %v92 = vadd.f32 %v54, %v87
    %v93 = vadd.f32 %v55, %v90
    %vm94 = vcmask 785408
    %95 = vst.msk [vmem:[#allocation2] sm:$0xff] %vm94, %v92
    %96 = vst.msk [vmem:[#allocation2 + $0x8] sm:$0xff] %vm94, %v93
    // Predicated region
    $region26: #{tpu_custom_call.1} parent=1 // pred_check
      %p97 = pneg %p47
    $region27: #{tpu_custom_call.1} parent=1 // pred_check_branch
      %99 = sbr.rel (%p97) target = $region29
    $region28: #{tpu_custom_call.1} parent=1 // pred_region
      %v100 = vld [vmem:[#allocation2] sm:$0xff]
      %v101 = vld [vmem:[#allocation2 + $0x8] sm:$0xff]
      %v102 = vld [vmem:[%s2] sm:$0x1]
      %v104 = vperm.slane %v102, 0
      %v106 = vadd.f32 %v100, %v104
      %v107 = vadd.f32 %v101, %v104
      %108 = vst.msk [vmem:[#allocation8] sm:$0xff] %vm94, %v106
      %109 = vst.msk [vmem:[#allocation8 + $0x8] sm:$0xff] %vm94, %v107
    $region29: #{tpu_custom_call.1} parent=1 // pred_fallthru
      _
    // Predicated region
    $region30: #{tpu_custom_call.1} parent=1 // pred_check
      _
    $region31: #{tpu_custom_call.1} parent=1 // pred_check_branch
      %111 = sbr.rel (0) target = $region33
    $region32: #{tpu_custom_call.1} parent=1 // pred_region
      %113 = vsyncadd [#allocation5], 0
      %s114 = sshll.u32 [#allocation8], 4
      %s115 = int_to_ptr.vmem [resolvable:$true] %s114
      %s116 = sshll.u32 %s3, 4
      %s117 = int_to_ptr.hbm [resolvable:$true] %s116
      %122 = dma.vmem_to_hbm [thread:$0]  %s115, 256, %s117, [#allocation5], 128, 128, 8
    $region33: #{tpu_custom_call.1} parent=1 // pred_fallthru
      _
    // Predicated region
    $region34: #{tpu_custom_call.1} parent=1 // pred_check
      _
    $region35: #{tpu_custom_call.1} parent=1 // pred_check_branch
      %124 = sbr.rel (0) target = $region37
    $region36: #{tpu_custom_call.1} parent=1 // pred_region
      %126 = dma.done [#allocation5], 256
    $region37: #{tpu_custom_call.1} parent=1 // pred_fallthru
      _
    %127 = vsyncpa [#allocation4], 1
    %128 = vsyncpa [#allocation7], 1
    %129 = vsyncpa [#allocation5], 1

</llo_original>
